<compile_context>
chip_gen: v6e
topology: v6e:2x2x1
jax: 0.10.0
libtpu: 0.0.40
codegen_flags: <defaults>
</compile_context>

<pallas_src>
import functools

import jax
import jax.numpy as jnp
from jax import lax
from jax.experimental import pallas as pl
from jax.experimental.pallas import tpu as pltpu


def _retrofit_loss_kernel(x_idx_ref, nb_idx_ref, x_orig_ref, w_ref, m_ref,
                          sqn_ref, emb_ref, out_ref, *, alpha, batch_size):
    tb = x_orig_ref.shape[0]
    vocab = emb_ref.shape[0]
    n_nb = nb_idx_ref.shape[1]
    f32 = jnp.float32

    embf = emb_ref[...].astype(f32)                              # (V, D)
    iota_v = lax.broadcasted_iota(jnp.int32, (tb, vocab), 1)     # (tb, V)

    # ---- anchor embeddings: one-hot gather on the MXU --------------------
    oh_x = (x_idx_ref[...] == iota_v).astype(f32)                # (tb, V)
    emb_x = jnp.dot(oh_x, embf, preferred_element_type=f32)      # (tb, D)  MXU

    d1 = emb_x - x_orig_ref[...].astype(f32)
    dif1 = jnp.sum(d1 * d1, axis=-1, keepdims=True)              # (tb, 1)

    # ---- neighbor term (algebraic MXU form) -------------------------------
    # coeff = weight * mask^2 (mask broadcasts over D in the reference).
    coeff = w_ref[...].astype(f32) * jnp.square(m_ref[...].astype(f32))  # (tb, N)
    nb_idx = nb_idx_ref[...]                                             # (tb, N)

    # A[b, v] = sum_n coeff[b, n] * [nb[b, n] == v].  N is small & static; the
    # unrolled body only touches (tb, V) tiles (no (tb, D) work, no scratch).
    a_mat = jnp.zeros((tb, vocab), dtype=f32)
    for n in range(n_nb):
        a_mat = a_mat + coeff[:, n:n + 1] * (nb_idx[:, n:n + 1] == iota_v).astype(f32)

    csum = jnp.sum(coeff, axis=-1, keepdims=True)                        # (tb, 1)
    s = jnp.dot(a_mat, embf, preferred_element_type=f32)                 # (tb, D)  MXU
    ex_sq = jnp.sum(emb_x * emb_x, axis=-1, keepdims=True)               # (tb, 1)
    cross = jnp.sum(emb_x * s, axis=-1, keepdims=True)                   # (tb, 1)
    nb_sq = jnp.sum(a_mat * sqn_ref[...].astype(f32), axis=-1, keepdims=True)  # (tb, 1)
    dif2 = csum * ex_sq - 2.0 * cross + nb_sq                            # (tb, 1)

    # TODO(synk): PyTorch `print(mask)` / `print(dif1_, dif2_)` side effects
    # are intentionally omitted (would need pl.debug_print in interpret mode).
    beta = jnp.float32(1.0)
    per_row = jnp.float32(alpha) * dif1 + beta * dif2                    # (tb, 1)

    # Mask padded tail rows, emit one partial sum per grid block (lane-dense
    # output: a single element instead of tb masked single-lane stores).
    base = pl.program_id(0) * tb
    row = base + lax.broadcasted_iota(jnp.int32, (tb, 1), 0)
    per_row = jnp.where(row < batch_size, per_row, 0.0)
    out_ref[0] = jnp.sum(per_row, keepdims=True)                         # (1, 1)


def _round_up(x, m):
    return (x + m - 1) // m * m


def retrofit_loss(embedding, x, x_original, x_neighbor, weight, alpha, mask):
    """embedding: (V, D) table. x: (B,) int. x_neighbor: (B, N) int."""
    V, D = embedding.shape
    B = x.shape[0]
    N = x_neighbor.shape[1]

    # Batch tile: multiple of 8 (sublane), large (<=512) to amortize the ~0.35us
    # per-grid-step overhead; per-tile footprint is only tb*(D + 3N + 2)*4 bytes.
    # For large B there are automatically >= 2 blocks, so the "parallel" grid
    # axis can still shard across v7x's two TensorCores.
    tb = min(512, _round_up(B, 8))
    b_pad = _round_up(B, tb)
    pad = b_pad - B
    num_blocks = b_pad // tb

    x_i = jnp.pad(x.astype(jnp.int32), (0, pad))[:, None]               # (b_pad, 1)
    nb_i = jnp.pad(x_neighbor.astype(jnp.int32), ((0, pad), (0, 0)))    # (b_pad, N)
    x_orig_p = jnp.pad(x_original, ((0, pad), (0, 0)))                  # (b_pad, D)
    weight_p = jnp.pad(weight, ((0, pad), (0, 0)))                      # (b_pad, N)
    mask_p = jnp.pad(mask, ((0, pad), (0, 0)))                          # (b_pad, N)

    # Per-row squared norms of the table, computed once (tiny XLA op).
    sqnorm = jnp.sum(jnp.square(embedding.astype(jnp.float32)), axis=-1)[None, :]  # (1, V)

    kernel = functools.partial(_retrofit_loss_kernel,
                               alpha=float(alpha), batch_size=int(B))

    itemsize = jnp.dtype(embedding.dtype).itemsize
    table_bytes = V * D * itemsize                      # single-buffered (Buffered(1))
    block_bytes = tb * (D + 3 * N + 2) * 4 + V * 4
    vmem_limit = int(min(48 * 2**20, max(16 * 2**20, 4 * (table_bytes + block_bytes))))

    per_block = pl.pallas_call(
        kernel,
        out_shape=jax.ShapeDtypeStruct((num_blocks, 1, 1), jnp.float32),
        grid=(num_blocks,),
        in_specs=[
            pl.BlockSpec((tb, 1), lambda i: (i, 0)),    # x indices
            pl.BlockSpec((tb, N), lambda i: (i, 0)),    # neighbor indices
            pl.BlockSpec((tb, D), lambda i: (i, 0)),    # x_original tile
            pl.BlockSpec((tb, N), lambda i: (i, 0)),    # weight tile
            pl.BlockSpec((tb, N), lambda i: (i, 0)),    # mask tile
            pl.BlockSpec((1, V), lambda i: (0, 0)),     # ||e_v||^2 row vector
            pl.BlockSpec((V, D), lambda i: (0, 0),      # embedding table, VMEM-resident,
                         pipeline_mode=pl.Buffered(1)), # single-buffered (constant index)
        ],
        out_specs=pl.BlockSpec((1, 1, 1), lambda i: (i, 0, 0)),
        compiler_params=pltpu.CompilerParams(
            dimension_semantics=("parallel",),          # batch blocks are independent
            vmem_limit_bytes=vmem_limit,
        ),
    )(x_i, nb_i, x_orig_p, weight_p, mask_p, sqnorm, embedding)

    # Padded rows were zeroed in-kernel; mean over the *global* batch.
    return jnp.sum(per_block) / B


def _reference_loss(embedding, x, x_original, x_neighbor, weight, alpha, mask):
    emb_x = embedding[x]                     # (B, D)
    emb_nb = embedding[x_neighbor]           # (B, N, D)
    dif1 = jnp.sum(jnp.square(emb_x - x_original), axis=-1)
    d2 = (emb_x[:, None, :] - emb_nb) * mask[:, :, None]
    dif2 = jnp.sum(weight * jnp.sum(jnp.square(d2), axis=-1), axis=-1)
    return jnp.mean(alpha * dif1 + 1.0 * dif2)


if __name__ == "__main__":
    key = jax.random.PRNGKey(0)
    k_emb, k_x, k_xo, k_nb, k_w, k_m = jax.random.split(key, 6)

    V, D = 16, 32      # vocab size, embedding dim
    B, N = 8, 4        # batch, num_neighbor

    embedding = jax.random.normal(k_emb, (V, D), dtype=jnp.float32)
    x = jax.random.randint(k_x, (B,), 0, V, dtype=jnp.int32)
    x_original = jax.random.normal(k_xo, (B, D), dtype=jnp.float32)
    x_neighbor = jax.random.randint(k_nb, (B, N), 0, V, dtype=jnp.int32)
    weight = jax.random.uniform(k_w, (B, N), dtype=jnp.float32)
    mask = (jax.random.uniform(k_m, (B, N)) > 0.3).astype(jnp.float32)
    alpha = 0.5

    loss = retrofit_loss(embedding, x, x_original, x_neighbor, weight, alpha, mask)
    loss = jax.block_until_ready(loss)

    ref = _reference_loss(embedding, x, x_original, x_neighbor, weight, alpha, mask)
    ref = jax.block_until_ready(ref)

    import numpy as np
    np.testing.assert_allclose(np.asarray(loss), np.asarray(ref), rtol=1e-5, atol=1e-3)
    print("KERNEL_OK")
</pallas_src>

<mosaic_0001>
module attributes {stable_mosaic.version = 11 : i64} {
  func.func @_retrofit_loss_kernel(%arg0: i32, %arg1: memref<8x1xi32, #tpu.memory_space<vmem>>, %arg2: memref<8x4xi32, #tpu.memory_space<vmem>>, %arg3: memref<8x32xf32, #tpu.memory_space<vmem>>, %arg4: memref<8x4xf32, #tpu.memory_space<vmem>>, %arg5: memref<8x4xf32, #tpu.memory_space<vmem>>, %arg6: memref<1x16xf32, #tpu.memory_space<vmem>>, %arg7: memref<16x32xf32, #tpu.memory_space<vmem>>, %arg8: memref<1x1x1xf32, #tpu.memory_space<vmem>>) attributes {dimension_semantics = [#tpu.dimension_semantics<parallel>], iteration_bounds = array<i64: 1>, scalar_prefetch = 0 : i64, scratch_operands = 0 : i64, tpu.core_type = #tpu.core_type<tc>, window_params = [{transform_indices = @transform_0, window_bounds = array<i64: 8, 1>}, {transform_indices = @transform_1, window_bounds = array<i64: 8, 4>}, {transform_indices = @transform_2, window_bounds = array<i64: 8, 32>}, {transform_indices = @transform_3, window_bounds = array<i64: 8, 4>}, {transform_indices = @transform_4, window_bounds = array<i64: 8, 4>}, {pipeline_mode = #tpu.pipeline_mode<synchronous>, transform_indices = @transform_5, window_bounds = array<i64: 1, 16>}, {pipeline_mode = #tpu.pipeline_mode<synchronous>, transform_indices = @transform_6, window_bounds = array<i64: 16, 32>}, {transform_indices = @transform_7, window_bounds = array<i64: 1, 1, 1>}]} {
    %c0 = arith.constant 0 : index
    %c0_0 = arith.constant 0 : index
    %0 = vector.load %arg7[%c0, %c0_0] : memref<16x32xf32, #tpu.memory_space<vmem>>, vector<16x32xf32>
    %1 = tpu.iota {dimensions = array<i32: 1>} : vector<8x16xi32>
    %c0_1 = arith.constant 0 : index
    %c0_2 = arith.constant 0 : index
    %2 = vector.load %arg1[%c0_1, %c0_2] : memref<8x1xi32, #tpu.memory_space<vmem>>, vector<8x1xi32>
    %3 = vector.broadcast %2 : vector<8x1xi32> to vector<8x16xi32>
    %4 = arith.cmpi eq, %3, %1 : vector<8x16xi32>
    %5 = arith.extui %4 : vector<8x16xi1> to vector<8x16xi32>
    %6 = arith.sitofp %5 : vector<8x16xi32> to vector<8x16xf32>
    %cst = arith.constant dense<0.000000e+00> : vector<8x32xf32>
    %7 = tpu.matmul %6, %0, %cst {dimension_numbers = #tpu.dot_dimension_numbers<[1], [0], [0], [1], [0, 0, 1, 1], [], []>} : vector<8x16xf32>, vector<16x32xf32>, vector<8x32xf32> -> vector<8x32xf32>
    %c0_3 = arith.constant 0 : index
    %c0_4 = arith.constant 0 : index
    %8 = vector.load %arg3[%c0_3, %c0_4] : memref<8x32xf32, #tpu.memory_space<vmem>>, vector<8x32xf32>
    %9 = arith.subf %7, %8 : vector<8x32xf32>
    %10 = arith.mulf %9, %9 : vector<8x32xf32>
    %cst_5 = arith.constant dense<0.000000e+00> : vector<8xf32>
    %11 = vector.multi_reduction <add>, %10, %cst_5 [1] : vector<8x32xf32> to vector<8xf32>
    %12 = vector.shape_cast %11 : vector<8xf32> to vector<8x1xf32>
    %c0_6 = arith.constant 0 : index
    %c0_7 = arith.constant 0 : index
    %13 = vector.load %arg4[%c0_6, %c0_7] : memref<8x4xf32, #tpu.memory_space<vmem>>, vector<8x4xf32>
    %c0_8 = arith.constant 0 : index
    %c0_9 = arith.constant 0 : index
    %14 = vector.load %arg5[%c0_8, %c0_9] : memref<8x4xf32, #tpu.memory_space<vmem>>, vector<8x4xf32>
    %15 = arith.mulf %14, %14 : vector<8x4xf32>
    %16 = arith.mulf %13, %15 : vector<8x4xf32>
    %c0_10 = arith.constant 0 : index
    %c0_11 = arith.constant 0 : index
    %17 = vector.load %arg2[%c0_10, %c0_11] : memref<8x4xi32, #tpu.memory_space<vmem>>, vector<8x4xi32>
    %cst_12 = arith.constant 0.000000e+00 : f32
    %18 = vector.broadcast %cst_12 : f32 to vector<8x16xf32>
    %19 = vector.extract_strided_slice %16 {offsets = [0, 0], sizes = [8, 1], strides = [1, 1]} : vector<8x4xf32> to vector<8x1xf32>
    %20 = vector.extract_strided_slice %17 {offsets = [0, 0], sizes = [8, 1], strides = [1, 1]} : vector<8x4xi32> to vector<8x1xi32>
    %21 = vector.broadcast %20 : vector<8x1xi32> to vector<8x16xi32>
    %22 = arith.cmpi eq, %21, %1 : vector<8x16xi32>
    %23 = arith.extui %22 : vector<8x16xi1> to vector<8x16xi32>
    %24 = arith.sitofp %23 : vector<8x16xi32> to vector<8x16xf32>
    %25 = vector.broadcast %19 : vector<8x1xf32> to vector<8x16xf32>
    %26 = arith.mulf %25, %24 : vector<8x16xf32>
    %27 = arith.addf %18, %26 : vector<8x16xf32>
    %28 = vector.extract_strided_slice %16 {offsets = [0, 1], sizes = [8, 1], strides = [1, 1]} : vector<8x4xf32> to vector<8x1xf32>
    %29 = vector.extract_strided_slice %17 {offsets = [0, 1], sizes = [8, 1], strides = [1, 1]} : vector<8x4xi32> to vector<8x1xi32>
    %30 = vector.broadcast %29 : vector<8x1xi32> to vector<8x16xi32>
    %31 = arith.cmpi eq, %30, %1 : vector<8x16xi32>
    %32 = arith.extui %31 : vector<8x16xi1> to vector<8x16xi32>
    %33 = arith.sitofp %32 : vector<8x16xi32> to vector<8x16xf32>
    %34 = vector.broadcast %28 : vector<8x1xf32> to vector<8x16xf32>
    %35 = arith.mulf %34, %33 : vector<8x16xf32>
    %36 = arith.addf %27, %35 : vector<8x16xf32>
    %37 = vector.extract_strided_slice %16 {offsets = [0, 2], sizes = [8, 1], strides = [1, 1]} : vector<8x4xf32> to vector<8x1xf32>
    %38 = vector.extract_strided_slice %17 {offsets = [0, 2], sizes = [8, 1], strides = [1, 1]} : vector<8x4xi32> to vector<8x1xi32>
    %39 = vector.broadcast %38 : vector<8x1xi32> to vector<8x16xi32>
    %40 = arith.cmpi eq, %39, %1 : vector<8x16xi32>
    %41 = arith.extui %40 : vector<8x16xi1> to vector<8x16xi32>
    %42 = arith.sitofp %41 : vector<8x16xi32> to vector<8x16xf32>
    %43 = vector.broadcast %37 : vector<8x1xf32> to vector<8x16xf32>
    %44 = arith.mulf %43, %42 : vector<8x16xf32>
    %45 = arith.addf %36, %44 : vector<8x16xf32>
    %46 = vector.extract_strided_slice %16 {offsets = [0, 3], sizes = [8, 1], strides = [1, 1]} : vector<8x4xf32> to vector<8x1xf32>
    %47 = vector.extract_strided_slice %17 {offsets = [0, 3], sizes = [8, 1], strides = [1, 1]} : vector<8x4xi32> to vector<8x1xi32>
    %48 = vector.broadcast %47 : vector<8x1xi32> to vector<8x16xi32>
    %49 = arith.cmpi eq, %48, %1 : vector<8x16xi32>
    %50 = arith.extui %49 : vector<8x16xi1> to vector<8x16xi32>
    %51 = arith.sitofp %50 : vector<8x16xi32> to vector<8x16xf32>
    %52 = vector.broadcast %46 : vector<8x1xf32> to vector<8x16xf32>
    %53 = arith.mulf %52, %51 : vector<8x16xf32>
    %54 = arith.addf %45, %53 : vector<8x16xf32>
    %cst_13 = arith.constant dense<0.000000e+00> : vector<8xf32>
    %55 = vector.multi_reduction <add>, %16, %cst_13 [1] : vector<8x4xf32> to vector<8xf32>
    %56 = vector.shape_cast %55 : vector<8xf32> to vector<8x1xf32>
    %cst_14 = arith.constant dense<0.000000e+00> : vector<8x32xf32>
    %57 = tpu.matmul %54, %0, %cst_14 {dimension_numbers = #tpu.dot_dimension_numbers<[1], [0], [0], [1], [0, 0, 1, 1], [], []>} : vector<8x16xf32>, vector<16x32xf32>, vector<8x32xf32> -> vector<8x32xf32>
    %58 = arith.mulf %7, %7 : vector<8x32xf32>
    %cst_15 = arith.constant dense<0.000000e+00> : vector<8xf32>
    %59 = vector.multi_reduction <add>, %58, %cst_15 [1] : vector<8x32xf32> to vector<8xf32>
    %60 = vector.shape_cast %59 : vector<8xf32> to vector<8x1xf32>
    %61 = arith.mulf %7, %57 : vector<8x32xf32>
    %cst_16 = arith.constant dense<0.000000e+00> : vector<8xf32>
    %62 = vector.multi_reduction <add>, %61, %cst_16 [1] : vector<8x32xf32> to vector<8xf32>
    %63 = vector.shape_cast %62 : vector<8xf32> to vector<8x1xf32>
    %c0_17 = arith.constant 0 : index
    %c0_18 = arith.constant 0 : index
    %64 = vector.load %arg6[%c0_17, %c0_18] : memref<1x16xf32, #tpu.memory_space<vmem>>, vector<1x16xf32>
    %65 = vector.broadcast %64 : vector<1x16xf32> to vector<8x16xf32>
    %66 = arith.mulf %54, %65 : vector<8x16xf32>
    %cst_19 = arith.constant dense<0.000000e+00> : vector<8xf32>
    %67 = vector.multi_reduction <add>, %66, %cst_19 [1] : vector<8x16xf32> to vector<8xf32>
    %68 = vector.shape_cast %67 : vector<8xf32> to vector<8x1xf32>
    %69 = arith.mulf %56, %60 : vector<8x1xf32>
    %cst_20 = arith.constant 2.000000e+00 : f32
    %70 = vector.broadcast %cst_20 : f32 to vector<8x1xf32>
    %71 = arith.mulf %70, %63 : vector<8x1xf32>
    %72 = arith.subf %69, %71 : vector<8x1xf32>
    %73 = arith.addf %72, %68 : vector<8x1xf32>
    %cst_21 = arith.constant 5.000000e-01 : f32
    %74 = vector.broadcast %cst_21 : f32 to vector<8x1xf32>
    %75 = arith.mulf %74, %12 : vector<8x1xf32>
    %cst_22 = arith.constant 1.000000e+00 : f32
    %76 = vector.broadcast %cst_22 : f32 to vector<8x1xf32>
    %77 = arith.mulf %76, %73 : vector<8x1xf32>
    %78 = arith.addf %75, %77 : vector<8x1xf32>
    %c8_i32 = arith.constant 8 : i32
    %79 = arith.muli %arg0, %c8_i32 : i32
    %80 = tpu.iota {dimensions = array<i32: 0>} : vector<8x1xi32>
    %81 = vector.broadcast %79 : i32 to vector<8x1xi32>
    %82 = arith.addi %81, %80 : vector<8x1xi32>
    %c8_i32_23 = arith.constant 8 : i32
    %83 = vector.broadcast %c8_i32_23 : i32 to vector<8x1xi32>
    %84 = arith.cmpi slt, %82, %83 : vector<8x1xi32>
    %cst_24 = arith.constant 0.000000e+00 : f32
    %85 = vector.broadcast %cst_24 : f32 to vector<8x1xf32>
    %86 = arith.select %84, %78, %85 : vector<8x1xi1>, vector<8x1xf32>
    %87 = vector.shape_cast %86 : vector<8x1xf32> to vector<1x8x1xf32>
    %cst_25 = arith.constant dense<0.000000e+00> : vector<1xf32>
    %88 = vector.multi_reduction <add>, %87, %cst_25 [1, 2] : vector<1x8x1xf32> to vector<1xf32>
    %89 = vector.shape_cast %88 : vector<1xf32> to vector<1x1x1xf32>
    %90 = vector.extract %89[0, 0, 0] : f32 from vector<1x1x1xf32>
    %91 = vector.broadcast %90 : f32 to vector<1x1xf32>
    %c0_26 = arith.constant 0 : index
    %c0_27 = arith.constant 0 : index
    %c0_28 = arith.constant 0 : index
    %92 = vector.load %arg8[%c0_26, %c0_27, %c0_28] : memref<1x1x1xf32, #tpu.memory_space<vmem>>, vector<1x1x1xf32>
    %93 = vector.shape_cast %92 : vector<1x1x1xf32> to vector<1x1xf32>
    %94 = vector.shape_cast %91 : vector<1x1xf32> to vector<1x1x1xf32>
    tpu.vector_store %arg8[%c0_26, %c0_27, %c0_28], %94 {strides = array<i32>} : memref<1x1x1xf32, #tpu.memory_space<vmem>>, vector<1x1x1xf32>,
    return
  }
  func.func @transform_0(%arg0: i32) -> (i32, i32) {
    %c0_i32 = arith.constant 0 : i32
    %c0_i32_0 = arith.constant 0 : i32
    return %arg0, %c0_i32 : i32, i32
  }
  func.func @transform_1(%arg0: i32) -> (i32, i32) {
    %c0_i32 = arith.constant 0 : i32
    %c0_i32_0 = arith.constant 0 : i32
    return %arg0, %c0_i32 : i32, i32
  }
  func.func @transform_2(%arg0: i32) -> (i32, i32) {
    %c0_i32 = arith.constant 0 : i32
    %c0_i32_0 = arith.constant 0 : i32
    return %arg0, %c0_i32 : i32, i32
  }
  func.func @transform_3(%arg0: i32) -> (i32, i32) {
    %c0_i32 = arith.constant 0 : i32
    %c0_i32_0 = arith.constant 0 : i32
    return %arg0, %c0_i32 : i32, i32
  }
  func.func @transform_4(%arg0: i32) -> (i32, i32) {
    %c0_i32 = arith.constant 0 : i32
    %c0_i32_0 = arith.constant 0 : i32
    return %arg0, %c0_i32 : i32, i32
  }
  func.func @transform_5(%arg0: i32) -> (i32, i32) {
    %c0_i32 = arith.constant 0 : i32
    %c0_i32_0 = arith.constant 0 : i32
    %c0_i32_1 = arith.constant 0 : i32
    return %c0_i32, %c0_i32_0 : i32, i32
  }
  func.func @transform_6(%arg0: i32) -> (i32, i32) {
    %c0_i32 = arith.constant 0 : i32
    %c0_i32_0 = arith.constant 0 : i32
    %c0_i32_1 = arith.constant 0 : i32
    return %c0_i32, %c0_i32_0 : i32, i32
  }
  func.func @transform_7(%arg0: i32) -> (i32, i32, i32) {
    %c0_i32 = arith.constant 0 : i32
    %c0_i32_0 = arith.constant 0 : i32
    %c0_i32_1 = arith.constant 0 : i32
    return %arg0, %c0_i32, %c0_i32_0 : i32, i32, i32
  }
}

</mosaic_0001>

<llo_original>
// kernel: tpu_custom_call.1
$region0: #{tpu_custom_call.1}
  #allocation0 [shape = 'u32[]', space=smem, size = 0x4, offset = 0x4, fixed_abs, tag = 'smem constant byte address 0x4 - core index']
  #allocation1 [shape = 'u32[144,128]{1,0:T(1,128)}', space=vmem, size = 0x12000, scoped, tag = 'internal scratch']
  %s0 = inlined_call_operand.vmem [shape: s32[8,1], index: 0, kind: input, shape index: {}]
  %s1 = inlined_call_operand.vmem [shape: s32[8,4], index: 1, kind: input, shape index: {}]
  %s2 = inlined_call_operand.vmem [shape: f32[8,32], index: 2, kind: input, shape index: {}]
  %s3 = inlined_call_operand.vmem [shape: f32[8,4], index: 3, kind: input, shape index: {}]
  %s4 = inlined_call_operand.vmem [shape: f32[8,4], index: 4, kind: input, shape index: {}]
  %s5 = inlined_call_operand.vmem [shape: f32[1,16], index: 5, kind: input, shape index: {}]
  %s6 = inlined_call_operand.vmem [shape: f32[16,32], index: 6, kind: input, shape index: {}]
  %s7 = inlined_call_operand.hbm [shape: f32[1,1,1], index: 7, kind: output, shape index: {}]
  %s8 = sld [smem:[#allocation0]]
  $region38: #{tpu_custom_call.1} parent=0
    _
  %s10 = ssub.s32 1, %s8
  %s11 = scalar_select 0, %s10, %s8
  $region1: #{tpu_custom_call.1} parent=0
    #allocation2 [shape = 'u8[512]{0}', space=vmem, size = 0x400, scoped, tag = 'output window, operand 0, single buffered']
    #allocation3 [shape = 's32[1]{0}', space=sflag, size = 0x4, scoped, tag = 'scoped memory for tpu_custom_call.1']
    %12 = vsyncpa [#allocation3], 0
    // Predicated region
    $region2: #{tpu_custom_call.1} parent=1 // pred_check
      _
    $region3: #{tpu_custom_call.1} parent=1 // pred_check_branch
      %14 = sbr.rel (0) target = $region5
    $region4: #{tpu_custom_call.1} parent=1 // pred_region
      _
    $region5: #{tpu_custom_call.1} parent=1 // pred_fallthru
      _
    // Predicated region
    $region6: #{tpu_custom_call.1} parent=1 // pred_check
      _
    $region7: #{tpu_custom_call.1} parent=1 // pred_check_branch
      %16 = sbr.rel (0) target = $region9
    $region8: #{tpu_custom_call.1} parent=1 // pred_region
      _
    $region9: #{tpu_custom_call.1} parent=1 // pred_fallthru
      _
    // Predicated region
    $region10: #{tpu_custom_call.1} parent=1 // pred_check
      _
    $region11: #{tpu_custom_call.1} parent=1 // pred_check_branch
      %18 = sbr.rel (0) target = $region13
    $region12: #{tpu_custom_call.1} parent=1 // pred_region
      _
    $region13: #{tpu_custom_call.1} parent=1 // pred_fallthru
      _
    // Predicated region
    $region14: #{tpu_custom_call.1} parent=1 // pred_check
      _
    $region15: #{tpu_custom_call.1} parent=1 // pred_check_branch
      %20 = sbr.rel (0) target = $region17
    $region16: #{tpu_custom_call.1} parent=1 // pred_region
      _
    $region17: #{tpu_custom_call.1} parent=1 // pred_fallthru
      _
    // Predicated region
    $region18: #{tpu_custom_call.1} parent=1 // pred_check
      _
    $region19: #{tpu_custom_call.1} parent=1 // pred_check_branch
      %22 = sbr.rel (0) target = $region21
    $region20: #{tpu_custom_call.1} parent=1 // pred_region
      _
    $region21: #{tpu_custom_call.1} parent=1 // pred_fallthru
      _
    // Predicated region
    $region22: #{tpu_custom_call.1} parent=1 // pred_check
      _
    $region23: #{tpu_custom_call.1} parent=1 // pred_check_branch
      %24 = sbr.rel (0) target = $region25
    $region24: #{tpu_custom_call.1} parent=1 // pred_region
      _
    $region25: #{tpu_custom_call.1} parent=1 // pred_fallthru
      _
    // Predicated region
    $region26: #{tpu_custom_call.1} parent=1 // pred_check
      _
    $region27: #{tpu_custom_call.1} parent=1 // pred_check_branch
      %26 = sbr.rel (0) target = $region29
    $region28: #{tpu_custom_call.1} parent=1 // pred_region
      _
    $region29: #{tpu_custom_call.1} parent=1 // pred_fallthru
      _
    %v27 = vld [vmem:[%s6] sm:$0xff]
    %v28 = vld [vmem:[%s6 + $0x8] sm:$0xff]
    %v29 = vlaneseq
    %v30 = vand.u32 %v29, 127
    %v31 = vld [vmem:[%s0] sm:$0xff]
    %32 = vset.pattern.permute.xlu0 0
    %33 = vperm.xlu0 %32, %v31
    %v34 = vpop.permute.xlu0 %33
    %vm35 = vcmp.eq.s32.totalorder %v34, %v30
    %v36 = vsel %vm35, 1, 0
    %v37 = vcvt.s32.f32 %v36
    %vm38 = vcmask 130048
    %v40 = vsel %vm38, %v37, 0
    %42 = vmatprep.subr.mxu0 0.0
    %43 = vmatpush1.msra.mxu0 0.0
    %44 = vmatprep.subr.mxu0 0.0
    %45 = vmatpush1.msra.mxu0 0.0
    %46 = vmatprep.subr.mxu0 0.0
    %47 = vmatpush1.msra.mxu0 0.0
    %48 = vmatprep.subr.mxu0 0.0
    %49 = vmatpush1.msra.mxu0 0.0
    %50 = vmatprep.subr.mxu0 0.0
    %51 = vmatpush1.msra.mxu0 0.0
    %52 = vmatprep.subr.mxu0 0.0
    %53 = vmatpush1.msra.mxu0 0.0
    %54 = vmatprep.subr.mxu0 0.0
    %55 = vmatpush1.msra.mxu0 0.0
    %56 = vmatprep.subr.mxu0 0.0
    %57 = vmatpush1.msra.mxu0 0.0
    %58 = vmatprep.subr.mxu0 0.0
    %59 = vmatpush1.msra.mxu0 0.0
    %60 = vmatprep.subr.mxu0 0.0
    %61 = vmatpush1.msra.mxu0 0.0
    %62 = vmatprep.subr.mxu0 0.0
    %63 = vmatpush1.msra.mxu0 0.0
    %64 = vmatprep.subr.mxu0 0.0
    %65 = vmatpush1.msra.mxu0 0.0
    %66 = vmatprep.subr.mxu0 0.0
    %67 = vmatpush1.msra.mxu0 0.0
    %68 = vmatprep.subr.mxu0 0.0
    %69 = vmatpush1.msra.mxu0 0.0
    %70 = vmatprep.subr.mxu0 0.0
    %71 = vmatpush1.msra.mxu0 %v28
    %72 = vmatprep.subr.mxu0 0.0
    %73 = vmatpush1.msra.mxu0 %v27
    %74 = vmatprep.subr.mxu0 0.0
    %75 = vmatpush2.msra.mxu0 0.0
    %76 = vmatprep.subr.mxu0 0.0
    %77 = vmatpush2.msra.mxu0 0.0
    %78 = vmatprep.subr.mxu0 0.0
    %79 = vmatpush2.msra.mxu0 0.0
    %80 = vmatprep.subr.mxu0 0.0
    %81 = vmatpush2.msra.mxu0 0.0
    %82 = vmatprep.subr.mxu0 0.0
    %83 = vmatpush2.msra.mxu0 0.0
    %84 = vmatprep.subr.mxu0 0.0
    %85 = vmatpush2.msra.mxu0 0.0
    %86 = vmatprep.subr.mxu0 0.0
    %87 = vmatpush2.msra.mxu0 0.0
    %88 = vmatprep.subr.mxu0 0.0
    %89 = vmatpush2.msra.mxu0 0.0
    %90 = vmatprep.subr.mxu0 0.0
    %91 = vmatpush2.msra.mxu0 0.0
    %92 = vmatprep.subr.mxu0 0.0
    %93 = vmatpush2.msra.mxu0 0.0
    %94 = vmatprep.subr.mxu0 0.0
    %95 = vmatpush2.msra.mxu0 0.0
    %96 = vmatprep.subr.mxu0 0.0
    %97 = vmatpush2.msra.mxu0 0.0
    %98 = vmatprep.subr.mxu0 0.0
    %99 = vmatpush2.msra.mxu0 0.0
    %100 = vmatprep.subr.mxu0 0.0
    %101 = vmatpush2.msra.mxu0 0.0
    %102 = vmatprep.subr.mxu0 0.0
    %103 = vmatpush2.msra.mxu0 0.0
    %104 = vmatprep.subr.mxu0 0.0
    %105 = vmatpush2.msra.mxu0 0.0
    %106 = vmatprep.mubr.f32.mxu0 0.0
    %107 = vmatmul.mubr.f32.gmra.mxu0 %v40
    %v108 = vpop.f32.mrf.mxu0
    %v109 = vadd.f32 0.0, %v108
    %v110 = vpop.f32.mrf.mxu0
    %111 = vdwg.mxu0
    %v112 = vld [vmem:[%s2] sm:$0xff]
    %v113 = vsub.f32 %v109, %v112
    %v114 = vmul.f32 %v113, %v113
    %vm115 = vcmask 261120
    %v116 = vsel %vm115, %v114, 0.0
    %117 = vadd.xlane.f32.xlu0 %v116
    %v118 = vpop.xlane.xlu0 %117
    %v119 = vld [vmem:[%s3] sm:$0xff]
    %v120 = vld [vmem:[%s4] sm:$0xff]
    %v121 = vmul.f32 %v120, %v120
    %v122 = vmul.f32 %v119, %v121
    %v123 = vld [vmem:[%s1] sm:$0xff]
    %124 = vset.pattern.permute.xlu0 0
    %125 = vperm.xlu0 %124, %v123
    %v126 = vpop.permute.xlu0 %125
    %vm127 = vcmp.eq.s32.totalorder %v126, %v30
    %v128 = vsel %vm127, 1, 0
    %v129 = vcvt.s32.f32 %v128
    %131 = vset.pattern.permute.xlu0 0
    %132 = vperm.xlu0 %131, %v122
    %v133 = vpop.permute.xlu0 %132
    %v135 = vmul.f32 %v133, %v129
    %v136 = vadd.f32 %v135, 0.0
    %137 = vset.pattern.permute.xlu0 1
    %138 = vperm.xlu0 %137, %v123
    %v139 = vpop.permute.xlu0 %138
    %vm140 = vcmp.eq.s32.totalorder %v139, %v30
    %v141 = vsel %vm140, 1, 0
    %v142 = vcvt.s32.f32 %v141
    %143 = vset.pattern.permute.xlu0 1
    %144 = vperm.xlu0 %143, %v122
    %v145 = vpop.permute.xlu0 %144
    %v147 = vmul.f32 %v145, %v142
    %v148 = vadd.f32 %v136, %v147
    %149 = vset.pattern.permute.xlu0 2
    %150 = vperm.xlu0 %149, %v123
    %v151 = vpop.permute.xlu0 %150
    %vm152 = vcmp.eq.s32.totalorder %v151, %v30
    %v153 = vsel %vm152, 1, 0
    %v154 = vcvt.s32.f32 %v153
    %155 = vset.pattern.permute.xlu0 2
    %156 = vperm.xlu0 %155, %v122
    %v157 = vpop.permute.xlu0 %156
    %v159 = vmul.f32 %v157, %v154
    %v160 = vadd.f32 %v148, %v159
    %161 = vset.pattern.permute.xlu0 3
    %162 = vperm.xlu0 %161, %v123
    %v163 = vpop.permute.xlu0 %162
    %vm164 = vcmp.eq.s32.totalorder %v163, %v30
    %v165 = vsel %vm164, 1, 0
    %v166 = vcvt.s32.f32 %v165
    %167 = vset.pattern.permute.xlu0 3
    %168 = vperm.xlu0 %167, %v122
    %v169 = vpop.permute.xlu0 %168
    %v171 = vmul.f32 %v169, %v166
    %v172 = vadd.f32 %v160, %v171
    %vm173 = vcmask 31744
    %v174 = vsel %vm173, %v122, 0.0
    %175 = vadd.xlane.f32.xlu0 %v174
    %v176 = vpop.xlane.xlu0 %175
    %v178 = vsel %vm38, %v172, 0
    %180 = vmatprep.subr.mxu0 0.0
    %181 = vmatpush1.msra.mxu0 0.0
    %182 = vmatprep.subr.mxu0 0.0
    %183 = vmatpush1.msra.mxu0 0.0
    %184 = vmatprep.subr.mxu0 0.0
    %185 = vmatpush1.msra.mxu0 0.0
    %186 = vmatprep.subr.mxu0 0.0
    %187 = vmatpush1.msra.mxu0 0.0
    %188 = vmatprep.subr.mxu0 0.0
    %189 = vmatpush1.msra.mxu0 0.0
    %190 = vmatprep.subr.mxu0 0.0
    %191 = vmatpush1.msra.mxu0 0.0
    %192 = vmatprep.subr.mxu0 0.0
    %193 = vmatpush1.msra.mxu0 0.0
    %194 = vmatprep.subr.mxu0 0.0
    %195 = vmatpush1.msra.mxu0 0.0
    %196 = vmatprep.subr.mxu0 0.0
    %197 = vmatpush1.msra.mxu0 0.0
    %198 = vmatprep.subr.mxu0 0.0
    %199 = vmatpush1.msra.mxu0 0.0
    %200 = vmatprep.subr.mxu0 0.0
    %201 = vmatpush1.msra.mxu0 0.0
    %202 = vmatprep.subr.mxu0 0.0
    %203 = vmatpush1.msra.mxu0 0.0
    %204 = vmatprep.subr.mxu0 0.0
    %205 = vmatpush1.msra.mxu0 0.0
    %206 = vmatprep.subr.mxu0 0.0
    %207 = vmatpush1.msra.mxu0 0.0
    %208 = vmatprep.subr.mxu0 0.0
    %209 = vmatpush1.msra.mxu0 %v28
    %210 = vmatprep.subr.mxu0 0.0
    %211 = vmatpush1.msra.mxu0 %v27
    %212 = vmatprep.subr.mxu0 0.0
    %213 = vmatpush2.msra.mxu0 0.0
    %214 = vmatprep.subr.mxu0 0.0
    %215 = vmatpush2.msra.mxu0 0.0
    %216 = vmatprep.subr.mxu0 0.0
    %217 = vmatpush2.msra.mxu0 0.0
    %218 = vmatprep.subr.mxu0 0.0
    %219 = vmatpush2.msra.mxu0 0.0
    %220 = vmatprep.subr.mxu0 0.0
    %221 = vmatpush2.msra.mxu0 0.0
    %222 = vmatprep.subr.mxu0 0.0
    %223 = vmatpush2.msra.mxu0 0.0
    %224 = vmatprep.subr.mxu0 0.0
    %225 = vmatpush2.msra.mxu0 0.0
    %226 = vmatprep.subr.mxu0 0.0
    %227 = vmatpush2.msra.mxu0 0.0
    %228 = vmatprep.subr.mxu0 0.0
    %229 = vmatpush2.msra.mxu0 0.0
    %230 = vmatprep.subr.mxu0 0.0
    %231 = vmatpush2.msra.mxu0 0.0
    %232 = vmatprep.subr.mxu0 0.0
    %233 = vmatpush2.msra.mxu0 0.0
    %234 = vmatprep.subr.mxu0 0.0
    %235 = vmatpush2.msra.mxu0 0.0
    %236 = vmatprep.subr.mxu0 0.0
    %237 = vmatpush2.msra.mxu0 0.0
    %238 = vmatprep.subr.mxu0 0.0
    %239 = vmatpush2.msra.mxu0 0.0
    %240 = vmatprep.subr.mxu0 0.0
    %241 = vmatpush2.msra.mxu0 0.0
    %242 = vmatprep.subr.mxu0 0.0
    %243 = vmatpush2.msra.mxu0 0.0
    %244 = vmatprep.mubr.f32.mxu0 0.0
    %245 = vmatmul.mubr.f32.gmra.mxu0 %v178
    %v246 = vpop.f32.mrf.mxu0
    %v247 = vadd.f32 0.0, %v246
    %v248 = vpop.f32.mrf.mxu0
    %249 = vdwg.mxu0
    %v250 = vmul.f32 %v109, %v109
    %v251 = vsel %vm115, %v250, 0.0
    %252 = vadd.xlane.f32.xlu0 %v251
    %v253 = vpop.xlane.xlu0 %252
    %v254 = vmul.f32 %v109, %v247
    %v255 = vsel %vm115, %v254, 0.0
    %256 = vadd.xlane.f32.xlu0 %v255
    %v257 = vpop.xlane.xlu0 %256
    %v258 = vld [vmem:[%s5] sm:$0x1]
    %v260 = vlaneseq
    %v261 = vshrl.u32 %v260, 7
    %v262 = vsub.s32 0, %v261
    %v263 = vrot.slane %v258, %v262
    %v265 = vmul.f32 %v172, %v263
    %v266 = vsel %vm38, %v265, 0.0
    %267 = vadd.xlane.f32.xlu0 %v266
    %v268 = vpop.xlane.xlu0 %267
    %v269 = vmul.f32 %v176, %v253
    %v270 = vmul.f32 %v257, 2.0
    %v271 = vsub.f32 %v269, %v270
    %v272 = vadd.f32 %v271, %v268
    %v273 = vmul.f32 %v118, 0.5
    %v274 = vadd.f32 %v273, %v272
    %s275 = smul.u32 0, 8
    %v276 = vlaneseq
    %v277 = vshrl.u32 %v276, 7
    %v278 = vstv %s275
    %v279 = vadd.s32 %v278, %v277
    %vm280 = vcmp.lt.s32.totalorder %v279, 8
    %v281 = vsel %vm280, %v274, 0.0
    %vm282 = vcmask 7168
    %v283 = vsel %vm282, %v281, 0.0
    %284 = vadd.xlane.f32.xlu0 %v283
    %v285 = vpop.xlane.xlu0 %284
    %v286 = vrot.slane %v285, 4
    %v287 = vadd.f32 %v285, %v286
    %v288 = vrot.slane %v287, 2
    %v289 = vadd.f32 %v287, %v288
    %v290 = vrot.slane %v289, 1
    %v291 = vadd.f32 %v289, %v290
    %s292 = vtos %v291
    %v293 = vstv %s292
    %vm294 = vcmask 0
    %295 = vst.msk [vmem:[#allocation2] sm:$0x1] %vm294, %v293
    // Predicated region
    $region30: #{tpu_custom_call.1} parent=1 // pred_check
      _
    $region31: #{tpu_custom_call.1} parent=1 // pred_check_branch
      %297 = sbr.rel (0) target = $region33
    $region32: #{tpu_custom_call.1} parent=1 // pred_region
      %s299 = ssub.s32 16, 16
      %300 = vsyncadd [#allocation3], %s299
      %s302 = sshll.u32 [#allocation2], 4
      %s303 = int_to_ptr.vmem [resolvable:$true] %s302
      %305 = dma.vmem_to_hbm [thread:$0]  %s303, 16, %s7, [#allocation3]
    $region33: #{tpu_custom_call.1} parent=1 // pred_fallthru
      _
    // Predicated region
    $region34: #{tpu_custom_call.1} parent=1 // pred_check
      _
    $region35: #{tpu_custom_call.1} parent=1 // pred_check_branch
      %307 = sbr.rel (0) target = $region37
    $region36: #{tpu_custom_call.1} parent=1 // pred_region
      %308 = dma.done [#allocation3], 16
    $region37: #{tpu_custom_call.1} parent=1 // pred_fallthru
      _
    %309 = vsyncpa [#allocation3], 1

</llo_original>
